<compile_context>
chip_gen: v6e
topology: v6e:2x2x1
jax: 0.10.0
libtpu: 0.0.40
codegen_flags: <defaults>
</compile_context>

<pallas_src>
import functools

import jax
import jax.numpy as jnp
from jax.experimental import pallas as pl
from jax.experimental.pallas import tpu as pltpu


def _round_up(n, m):
    return ((n + m - 1) // m) * m


def residual_block_kernel(xt_ref, w1_ref, b1_ref, w2_ref, b2_ref, ot_ref):
    # Feature-major tiles: xt (data_dim, B), w1 (hidden, data), b1 (hidden, 1),
    # w2 (data, hidden), b2 (data, 1), out (data_dim, B).  B (batch) is the
    # lane axis, so bias add / ReLU / residual add run at full lane density.
    xt = xt_ref[...]
    h = jnp.dot(w1_ref[...], xt, preferred_element_type=jnp.float32) + b1_ref[...]
    h = jnp.maximum(h, 0.0)
    # NOTE: if weights are later switched to bf16, this astype is a conscious
    # downcast of the intermediate; accumulation stays f32 via
    # preferred_element_type.
    y = jnp.dot(w2_ref[...], h.astype(w2_ref.dtype),
                preferred_element_type=jnp.float32) + b2_ref[...]
    y = jnp.maximum(y, 0.0)
    ot_ref[...] = (xt.astype(jnp.float32) + y).astype(ot_ref.dtype)


@functools.partial(jax.jit, static_argnames=("block_batch",))
def residual_block(x, w1, b1, w2, b2, *, block_batch=None):
    """Fused residual MLP block.

    Args (PyTorch nn.Linear layout):
      x:  (batch, data_dim)
      w1: (hidden_dim, data_dim),  b1: (hidden_dim,)
      w2: (data_dim, hidden_dim),  b2: (data_dim,)
    Returns: (batch, data_dim) = x + relu(relu(x @ w1.T + b1) @ w2.T + b2)
    """
    batch, data_dim = x.shape
    hidden_dim = w1.shape[0]

    # Lane-dense layout: batch on the last (lane) axis.
    xt = x.T                               # (data_dim, batch)
    b1c = b1.reshape(hidden_dim, 1)
    b2c = b2.reshape(data_dim, 1)

    if block_batch is None:
        # One grid step for small problems (single TC on v5e/v6e).  For very
        # large batches cap the tile; VMEM is still tiny at these feature dims.
        # v7x users can pass block_batch = padded_batch // 2 to use both TCs.
        block_batch = min(_round_up(batch, 128), 2048)
    block_batch = _round_up(block_batch, 128)

    padded = _round_up(batch, block_batch)
    if padded != batch:
        xt = jnp.pad(xt, ((0, 0), (0, padded - batch)))

    grid = (padded // block_batch,)

    flops = 4 * padded * data_dim * hidden_dim + padded * (3 * data_dim + hidden_dim)
    bytes_accessed = 4 * (2 * padded * data_dim            # x in, out
                          + 2 * data_dim * hidden_dim      # weights
                          + hidden_dim + data_dim)         # biases

    out_t = pl.pallas_call(
        residual_block_kernel,
        out_shape=jax.ShapeDtypeStruct((data_dim, padded), x.dtype),
        grid_spec=pltpu.PrefetchScalarGridSpec(
            num_scalar_prefetch=0,
            grid=grid,
            in_specs=[
                pl.BlockSpec((data_dim, block_batch), lambda i: (0, i)),
                pl.BlockSpec((hidden_dim, data_dim), lambda i: (0, 0)),
                pl.BlockSpec((hidden_dim, 1), lambda i: (0, 0)),
                pl.BlockSpec((data_dim, hidden_dim), lambda i: (0, 0)),
                pl.BlockSpec((data_dim, 1), lambda i: (0, 0)),
            ],
            out_specs=pl.BlockSpec((data_dim, block_batch), lambda i: (0, i)),
        ),
        compiler_params=pltpu.CompilerParams(
            dimension_semantics=("parallel",)),
        cost_estimate=pl.CostEstimate(
            flops=flops, transcendentals=0, bytes_accessed=bytes_accessed),
    )(xt, w1, b1c, w2, b2c)

    return out_t[:, :batch].T


def reference(x, w1, b1, w2, b2):
    h = jnp.maximum(x @ w1.T + b1, 0.0)
    y = jnp.maximum(h @ w2.T + b2, 0.0)
    return x + y


if __name__ == "__main__":
    # Shapes consistent with ResidualBlock(data_dim=16, hidden_dim=32).
    batch, data_dim, hidden_dim = 128, 16, 32

    key = jax.random.PRNGKey(0)
    kx, k1, k2, k3, k4 = jax.random.split(key, 5)

    x = jax.random.normal(kx, (batch, data_dim), dtype=jnp.float32)
    # PyTorch nn.Linear layout: W (out_features, in_features), b (out_features,).
    # Uniform init with scale 1/sqrt(fan_in) like PyTorch's default.
    w1 = jax.random.uniform(k1, (hidden_dim, data_dim), jnp.float32,
                            -1.0 / data_dim**0.5, 1.0 / data_dim**0.5)
    b1 = jax.random.uniform(k2, (hidden_dim,), jnp.float32,
                            -1.0 / data_dim**0.5, 1.0 / data_dim**0.5)
    w2 = jax.random.uniform(k3, (data_dim, hidden_dim), jnp.float32,
                            -1.0 / hidden_dim**0.5, 1.0 / hidden_dim**0.5)
    b2 = jax.random.uniform(k4, (data_dim,), jnp.float32,
                            -1.0 / hidden_dim**0.5, 1.0 / hidden_dim**0.5)

    out = residual_block(x, w1, b1, w2, b2)
    jax.block_until_ready(out)

    ref = reference(x, w1, b1, w2, b2)
    assert out.shape == (batch, data_dim)
    assert jnp.allclose(out, ref, atol=1e-5, rtol=1e-5)

    # Also exercise a non-multiple batch (padded/masked path).
    x_odd = jax.random.normal(kx, (100, data_dim), dtype=jnp.float32)
    out_odd = residual_block(x_odd, w1, b1, w2, b2)
    jax.block_until_ready(out_odd)
    assert jnp.allclose(out_odd, reference(x_odd, w1, b1, w2, b2),
                        atol=1e-5, rtol=1e-5)

    print("KERNEL_OK")
</pallas_src>

<mosaic_0001>
module attributes {stable_mosaic.version = 11 : i64} {
  func.func @residual_block_kernel(%arg0: i32, %arg1: memref<16x128xf32, #tpu.memory_space<vmem>>, %arg2: memref<32x16xf32, #tpu.memory_space<vmem>>, %arg3: memref<32x1xf32, #tpu.memory_space<vmem>>, %arg4: memref<16x32xf32, #tpu.memory_space<vmem>>, %arg5: memref<16x1xf32, #tpu.memory_space<vmem>>, %arg6: memref<16x128xf32, #tpu.memory_space<vmem>>) attributes {dimension_semantics = [#tpu.dimension_semantics<parallel>], iteration_bounds = array<i64: 1>, scalar_prefetch = 0 : i64, scratch_operands = 0 : i64, tpu.core_type = #tpu.core_type<tc>, window_params = [{transform_indices = @transform_0, window_bounds = array<i64: 16, 128>}, {pipeline_mode = #tpu.pipeline_mode<synchronous>, transform_indices = @transform_1, window_bounds = array<i64: 32, 16>}, {pipeline_mode = #tpu.pipeline_mode<synchronous>, transform_indices = @transform_2, window_bounds = array<i64: 32, 1>}, {pipeline_mode = #tpu.pipeline_mode<synchronous>, transform_indices = @transform_3, window_bounds = array<i64: 16, 32>}, {pipeline_mode = #tpu.pipeline_mode<synchronous>, transform_indices = @transform_4, window_bounds = array<i64: 16, 1>}, {transform_indices = @transform_5, window_bounds = array<i64: 16, 128>}]} {
    %c0 = arith.constant 0 : index
    %c0_0 = arith.constant 0 : index
    %0 = vector.load %arg1[%c0, %c0_0] : memref<16x128xf32, #tpu.memory_space<vmem>>, vector<16x128xf32>
    %c0_1 = arith.constant 0 : index
    %c0_2 = arith.constant 0 : index
    %1 = vector.load %arg2[%c0_1, %c0_2] : memref<32x16xf32, #tpu.memory_space<vmem>>, vector<32x16xf32>
    %cst = arith.constant dense<0.000000e+00> : vector<32x128xf32>
    %2 = tpu.matmul %1, %0, %cst {dimension_numbers = #tpu.dot_dimension_numbers<[1], [0], [0], [1], [0, 0, 1, 1], [], []>} : vector<32x16xf32>, vector<16x128xf32>, vector<32x128xf32> -> vector<32x128xf32>
    %c0_3 = arith.constant 0 : index
    %c0_4 = arith.constant 0 : index
    %3 = vector.load %arg3[%c0_3, %c0_4] : memref<32x1xf32, #tpu.memory_space<vmem>>, vector<32x1xf32>
    %4 = vector.broadcast %3 : vector<32x1xf32> to vector<32x128xf32>
    %5 = arith.addf %2, %4 : vector<32x128xf32>
    %cst_5 = arith.constant 0.000000e+00 : f32
    %6 = vector.broadcast %cst_5 : f32 to vector<32x128xf32>
    %7 = arith.maximumf %5, %6 : vector<32x128xf32>
    %c0_6 = arith.constant 0 : index
    %c0_7 = arith.constant 0 : index
    %8 = vector.load %arg4[%c0_6, %c0_7] : memref<16x32xf32, #tpu.memory_space<vmem>>, vector<16x32xf32>
    %cst_8 = arith.constant dense<0.000000e+00> : vector<16x128xf32>
    %9 = tpu.matmul %8, %7, %cst_8 {dimension_numbers = #tpu.dot_dimension_numbers<[1], [0], [0], [1], [0, 0, 1, 1], [], []>} : vector<16x32xf32>, vector<32x128xf32>, vector<16x128xf32> -> vector<16x128xf32>
    %c0_9 = arith.constant 0 : index
    %c0_10 = arith.constant 0 : index
    %10 = vector.load %arg5[%c0_9, %c0_10] : memref<16x1xf32, #tpu.memory_space<vmem>>, vector<16x1xf32>
    %11 = vector.broadcast %10 : vector<16x1xf32> to vector<16x128xf32>
    %12 = arith.addf %9, %11 : vector<16x128xf32>
    %cst_11 = arith.constant 0.000000e+00 : f32
    %13 = vector.broadcast %cst_11 : f32 to vector<16x128xf32>
    %14 = arith.maximumf %12, %13 : vector<16x128xf32>
    %15 = arith.addf %0, %14 : vector<16x128xf32>
    %c0_12 = arith.constant 0 : index
    %c0_13 = arith.constant 0 : index
    %16 = vector.load %arg6[%c0_12, %c0_13] : memref<16x128xf32, #tpu.memory_space<vmem>>, vector<16x128xf32>
    tpu.vector_store %arg6[%c0_12, %c0_13], %15 {strides = array<i32>} : memref<16x128xf32, #tpu.memory_space<vmem>>, vector<16x128xf32>,
    return
  }
  func.func @transform_0(%arg0: i32) -> (i32, i32) {
    %c0_i32 = arith.constant 0 : i32
    %c0_i32_0 = arith.constant 0 : i32
    return %c0_i32, %arg0 : i32, i32
  }
  func.func @transform_1(%arg0: i32) -> (i32, i32) {
    %c0_i32 = arith.constant 0 : i32
    %c0_i32_0 = arith.constant 0 : i32
    %c0_i32_1 = arith.constant 0 : i32
    return %c0_i32, %c0_i32_0 : i32, i32
  }
  func.func @transform_2(%arg0: i32) -> (i32, i32) {
    %c0_i32 = arith.constant 0 : i32
    %c0_i32_0 = arith.constant 0 : i32
    %c0_i32_1 = arith.constant 0 : i32
    return %c0_i32, %c0_i32_0 : i32, i32
  }
  func.func @transform_3(%arg0: i32) -> (i32, i32) {
    %c0_i32 = arith.constant 0 : i32
    %c0_i32_0 = arith.constant 0 : i32
    %c0_i32_1 = arith.constant 0 : i32
    return %c0_i32, %c0_i32_0 : i32, i32
  }
  func.func @transform_4(%arg0: i32) -> (i32, i32) {
    %c0_i32 = arith.constant 0 : i32
    %c0_i32_0 = arith.constant 0 : i32
    %c0_i32_1 = arith.constant 0 : i32
    return %c0_i32, %c0_i32_0 : i32, i32
  }
  func.func @transform_5(%arg0: i32) -> (i32, i32) {
    %c0_i32 = arith.constant 0 : i32
    %c0_i32_0 = arith.constant 0 : i32
    return %c0_i32, %arg0 : i32, i32
  }
}

</mosaic_0001>

<llo_original>
// kernel: residual_block.1
$region0: #{residual_block.1}
  #allocation0 [shape = 'u32[]', space=smem, size = 0x4, offset = 0x4, fixed_abs, tag = 'smem constant byte address 0x4 - core index']
  #allocation1 [shape = 'u32[144,128]{1,0:T(1,128)}', space=vmem, size = 0x12000, scoped, tag = 'internal scratch']
  %s0 = inlined_call_operand.vmem [shape: f32[16,128], index: 0, kind: input, shape index: {}]
  %s1 = inlined_call_operand.vmem [shape: f32[32,16], index: 1, kind: input, shape index: {}]
  %s2 = inlined_call_operand.vmem [shape: f32[32,1], index: 2, kind: input, shape index: {}]
  %s3 = inlined_call_operand.vmem [shape: f32[16,32], index: 3, kind: input, shape index: {}]
  %s4 = inlined_call_operand.vmem [shape: f32[16,1], index: 4, kind: input, shape index: {}]
  %s5 = inlined_call_operand.hbm [shape: f32[16,128], index: 5, kind: output, shape index: {}]
  %s6 = sld [smem:[#allocation0]]
  $region30: #{residual_block.1} parent=0
    _
  %s8 = ssub.s32 1, %s6
  %s9 = scalar_select 0, %s8, %s6
  $region1: #{residual_block.1} parent=0
    #allocation2 [shape = 'u8[8192]{0}', space=vmem, size = 0x2000, scoped, tag = 'output window, operand 0, single buffered']
    #allocation3 [shape = 's32[1]{0}', space=sflag, size = 0x4, scoped, tag = 'scoped memory for residual_block.1']
    %10 = vsyncpa [#allocation3], 0
    // Predicated region
    $region2: #{residual_block.1} parent=1 // pred_check
      _
    $region3: #{residual_block.1} parent=1 // pred_check_branch
      %12 = sbr.rel (0) target = $region5
    $region4: #{residual_block.1} parent=1 // pred_region
      _
    $region5: #{residual_block.1} parent=1 // pred_fallthru
      _
    // Predicated region
    $region6: #{residual_block.1} parent=1 // pred_check
      _
    $region7: #{residual_block.1} parent=1 // pred_check_branch
      %14 = sbr.rel (0) target = $region9
    $region8: #{residual_block.1} parent=1 // pred_region
      _
    $region9: #{residual_block.1} parent=1 // pred_fallthru
      _
    // Predicated region
    $region10: #{residual_block.1} parent=1 // pred_check
      _
    $region11: #{residual_block.1} parent=1 // pred_check_branch
      %16 = sbr.rel (0) target = $region13
    $region12: #{residual_block.1} parent=1 // pred_region
      _
    $region13: #{residual_block.1} parent=1 // pred_fallthru
      _
    // Predicated region
    $region14: #{residual_block.1} parent=1 // pred_check
      _
    $region15: #{residual_block.1} parent=1 // pred_check_branch
      %18 = sbr.rel (0) target = $region17
    $region16: #{residual_block.1} parent=1 // pred_region
      _
    $region17: #{residual_block.1} parent=1 // pred_fallthru
      _
    // Predicated region
    $region18: #{residual_block.1} parent=1 // pred_check
      _
    $region19: #{residual_block.1} parent=1 // pred_check_branch
      %20 = sbr.rel (0) target = $region21
    $region20: #{residual_block.1} parent=1 // pred_region
      _
    $region21: #{residual_block.1} parent=1 // pred_fallthru
      _
    %v21 = vld [vmem:[%s0] sm:$0xff]
    %v22 = vld [vmem:[%s0 + $0x8] sm:$0xff]
    %v23 = vld [vmem:[%s1] sm:$0xff]
    %v24 = vld [vmem:[%s1 + $0x8] sm:$0xff]
    %v25 = vld [vmem:[%s1 + $0x10] sm:$0xff]
    %v26 = vld [vmem:[%s1 + $0x18] sm:$0xff]
    %v27 = vld [vmem:[%s2] sm:$0xff]
    %v28 = vld [vmem:[%s2 + $0x8] sm:$0xff]
    %v29 = vld [vmem:[%s2 + $0x10] sm:$0xff]
    %v30 = vld [vmem:[%s2 + $0x18] sm:$0xff]
    %32 = vset.pattern.permute.xlu0 0
    %33 = vperm.xlu0 %32, %v27
    %v34 = vpop.permute.xlu0 %33
    %37 = vset.pattern.permute.xlu0 0
    %38 = vperm.xlu0 %37, %v28
    %v39 = vpop.permute.xlu0 %38
    %42 = vset.pattern.permute.xlu0 0
    %43 = vperm.xlu0 %42, %v29
    %v44 = vpop.permute.xlu0 %43
    %47 = vset.pattern.permute.xlu0 0
    %48 = vperm.xlu0 %47, %v30
    %v49 = vpop.permute.xlu0 %48
    %vm51 = vcmask 130048
    %v53 = vsel %vm51, %v23, 0
    %v56 = vsel %vm51, %v24, 0
    %v59 = vsel %vm51, %v25, 0
    %v62 = vsel %vm51, %v26, 0
    %64 = vmatprep.subr.mxu0 0.0
    %65 = vmatpush1.msra.mxu0 0.0
    %66 = vmatprep.subr.mxu0 0.0
    %67 = vmatpush1.msra.mxu0 0.0
    %68 = vmatprep.subr.mxu0 0.0
    %69 = vmatpush1.msra.mxu0 0.0
    %70 = vmatprep.subr.mxu0 0.0
    %71 = vmatpush1.msra.mxu0 0.0
    %72 = vmatprep.subr.mxu0 0.0
    %73 = vmatpush1.msra.mxu0 0.0
    %74 = vmatprep.subr.mxu0 0.0
    %75 = vmatpush1.msra.mxu0 0.0
    %76 = vmatprep.subr.mxu0 0.0
    %77 = vmatpush1.msra.mxu0 0.0
    %78 = vmatprep.subr.mxu0 0.0
    %79 = vmatpush1.msra.mxu0 0.0
    %80 = vmatprep.subr.mxu0 0.0
    %81 = vmatpush1.msra.mxu0 0.0
    %82 = vmatprep.subr.mxu0 0.0
    %83 = vmatpush1.msra.mxu0 0.0
    %84 = vmatprep.subr.mxu0 0.0
    %85 = vmatpush1.msra.mxu0 0.0
    %86 = vmatprep.subr.mxu0 0.0
    %87 = vmatpush1.msra.mxu0 0.0
    %88 = vmatprep.subr.mxu0 0.0
    %89 = vmatpush1.msra.mxu0 0.0
    %90 = vmatprep.subr.mxu0 0.0
    %91 = vmatpush1.msra.mxu0 0.0
    %92 = vmatprep.subr.mxu0 0.0
    %93 = vmatpush1.msra.mxu0 %v22
    %94 = vmatprep.subr.mxu0 0.0
    %95 = vmatpush1.msra.mxu0 %v21
    %96 = vmatprep.subr.mxu0 0.0
    %97 = vmatpush2.msra.mxu0 0.0
    %98 = vmatprep.subr.mxu0 0.0
    %99 = vmatpush2.msra.mxu0 0.0
    %100 = vmatprep.subr.mxu0 0.0
    %101 = vmatpush2.msra.mxu0 0.0
    %102 = vmatprep.subr.mxu0 0.0
    %103 = vmatpush2.msra.mxu0 0.0
    %104 = vmatprep.subr.mxu0 0.0
    %105 = vmatpush2.msra.mxu0 0.0
    %106 = vmatprep.subr.mxu0 0.0
    %107 = vmatpush2.msra.mxu0 0.0
    %108 = vmatprep.subr.mxu0 0.0
    %109 = vmatpush2.msra.mxu0 0.0
    %110 = vmatprep.subr.mxu0 0.0
    %111 = vmatpush2.msra.mxu0 0.0
    %112 = vmatprep.subr.mxu0 0.0
    %113 = vmatpush2.msra.mxu0 0.0
    %114 = vmatprep.subr.mxu0 0.0
    %115 = vmatpush2.msra.mxu0 0.0
    %116 = vmatprep.subr.mxu0 0.0
    %117 = vmatpush2.msra.mxu0 0.0
    %118 = vmatprep.subr.mxu0 0.0
    %119 = vmatpush2.msra.mxu0 0.0
    %120 = vmatprep.subr.mxu0 0.0
    %121 = vmatpush2.msra.mxu0 0.0
    %122 = vmatprep.subr.mxu0 0.0
    %123 = vmatpush2.msra.mxu0 0.0
    %124 = vmatprep.subr.mxu0 0.0
    %125 = vmatpush2.msra.mxu0 0.0
    %126 = vmatprep.subr.mxu0 0.0
    %127 = vmatpush2.msra.mxu0 0.0
    %128 = vmatprep.mubr.f32.mxu0 0.0
    %129 = vmatmul.mubr.f32.gmra.mxu0 %v53
    %v130 = vpop.f32.mrf.mxu0
    %v131 = vadd.f32 %v34, %v130
    %v132 = vpop.f32.mrf.mxu0
    %133 = vmatprep.mubr.f32.mxu0 0.0
    %134 = vmatmul.mubr.f32.gmra.mxu0 %v56
    %v135 = vpop.f32.mrf.mxu0
    %v136 = vadd.f32 %v39, %v135
    %v137 = vpop.f32.mrf.mxu0
    %138 = vmatprep.mubr.f32.mxu0 0.0
    %139 = vmatmul.mubr.f32.gmra.mxu0 %v59
    %v140 = vpop.f32.mrf.mxu0
    %v141 = vadd.f32 %v44, %v140
    %v142 = vpop.f32.mrf.mxu0
    %143 = vmatprep.mubr.f32.mxu0 0.0
    %144 = vmatmul.mubr.f32.gmra.mxu0 %v62
    %v145 = vpop.f32.mrf.mxu0
    %v146 = vadd.f32 %v49, %v145
    %v147 = vpop.f32.mrf.mxu0
    %148 = vdwg.mxu0
    %v149 = vmax.f32 %v131, 0.0
    %v150 = vmax.f32 %v136, 0.0
    %v151 = vmax.f32 %v141, 0.0
    %v152 = vmax.f32 %v146, 0.0
    %v153 = vld [vmem:[%s3] sm:$0xff]
    %v154 = vld [vmem:[%s3 + $0x8] sm:$0xff]
    %v155 = vld [vmem:[%s4] sm:$0xff]
    %v156 = vld [vmem:[%s4 + $0x8] sm:$0xff]
    %158 = vset.pattern.permute.xlu0 0
    %159 = vperm.xlu0 %158, %v155
    %v160 = vpop.permute.xlu0 %159
    %163 = vset.pattern.permute.xlu0 0
    %164 = vperm.xlu0 %163, %v156
    %v165 = vpop.permute.xlu0 %164
    %vm167 = vcmask 261120
    %v169 = vsel %vm167, %v153, 0
    %v172 = vsel %vm167, %v154, 0
    %174 = vmatprep.subr.mxu0 0.0
    %175 = vmatpush1.msra.mxu0 0.0
    %176 = vmatprep.subr.mxu0 0.0
    %177 = vmatpush1.msra.mxu0 0.0
    %178 = vmatprep.subr.mxu0 0.0
    %179 = vmatpush1.msra.mxu0 0.0
    %180 = vmatprep.subr.mxu0 0.0
    %181 = vmatpush1.msra.mxu0 0.0
    %182 = vmatprep.subr.mxu0 0.0
    %183 = vmatpush1.msra.mxu0 0.0
    %184 = vmatprep.subr.mxu0 0.0
    %185 = vmatpush1.msra.mxu0 0.0
    %186 = vmatprep.subr.mxu0 0.0
    %187 = vmatpush1.msra.mxu0 0.0
    %188 = vmatprep.subr.mxu0 0.0
    %189 = vmatpush1.msra.mxu0 0.0
    %190 = vmatprep.subr.mxu0 0.0
    %191 = vmatpush1.msra.mxu0 0.0
    %192 = vmatprep.subr.mxu0 0.0
    %193 = vmatpush1.msra.mxu0 0.0
    %194 = vmatprep.subr.mxu0 0.0
    %195 = vmatpush1.msra.mxu0 0.0
    %196 = vmatprep.subr.mxu0 0.0
    %197 = vmatpush1.msra.mxu0 0.0
    %198 = vmatprep.subr.mxu0 0.0
    %199 = vmatpush1.msra.mxu0 %v152
    %200 = vmatprep.subr.mxu0 0.0
    %201 = vmatpush1.msra.mxu0 %v151
    %202 = vmatprep.subr.mxu0 0.0
    %203 = vmatpush1.msra.mxu0 %v150
    %204 = vmatprep.subr.mxu0 0.0
    %205 = vmatpush1.msra.mxu0 %v149
    %206 = vmatprep.subr.mxu0 0.0
    %207 = vmatpush2.msra.mxu0 0.0
    %208 = vmatprep.subr.mxu0 0.0
    %209 = vmatpush2.msra.mxu0 0.0
    %210 = vmatprep.subr.mxu0 0.0
    %211 = vmatpush2.msra.mxu0 0.0
    %212 = vmatprep.subr.mxu0 0.0
    %213 = vmatpush2.msra.mxu0 0.0
    %214 = vmatprep.subr.mxu0 0.0
    %215 = vmatpush2.msra.mxu0 0.0
    %216 = vmatprep.subr.mxu0 0.0
    %217 = vmatpush2.msra.mxu0 0.0
    %218 = vmatprep.subr.mxu0 0.0
    %219 = vmatpush2.msra.mxu0 0.0
    %220 = vmatprep.subr.mxu0 0.0
    %221 = vmatpush2.msra.mxu0 0.0
    %222 = vmatprep.subr.mxu0 0.0
    %223 = vmatpush2.msra.mxu0 0.0
    %224 = vmatprep.subr.mxu0 0.0
    %225 = vmatpush2.msra.mxu0 0.0
    %226 = vmatprep.subr.mxu0 0.0
    %227 = vmatpush2.msra.mxu0 0.0
    %228 = vmatprep.subr.mxu0 0.0
    %229 = vmatpush2.msra.mxu0 0.0
    %230 = vmatprep.subr.mxu0 0.0
    %231 = vmatpush2.msra.mxu0 0.0
    %232 = vmatprep.subr.mxu0 0.0
    %233 = vmatpush2.msra.mxu0 0.0
    %234 = vmatprep.subr.mxu0 0.0
    %235 = vmatpush2.msra.mxu0 0.0
    %236 = vmatprep.subr.mxu0 0.0
    %237 = vmatpush2.msra.mxu0 0.0
    %238 = vmatprep.mubr.f32.mxu0 0.0
    %239 = vmatmul.mubr.f32.gmra.mxu0 %v169
    %v240 = vpop.f32.mrf.mxu0
    %v241 = vadd.f32 %v160, %v240
    %v242 = vpop.f32.mrf.mxu0
    %243 = vmatprep.mubr.f32.mxu0 0.0
    %244 = vmatmul.mubr.f32.gmra.mxu0 %v172
    %v245 = vpop.f32.mrf.mxu0
    %v246 = vadd.f32 %v165, %v245
    %v247 = vpop.f32.mrf.mxu0
    %248 = vdwg.mxu0
    %v249 = vmax.f32 %v241, 0.0
    %v250 = vmax.f32 %v246, 0.0
    %v251 = vadd.f32 %v21, %v249
    %v252 = vadd.f32 %v22, %v250
    %253 = vst [vmem:[#allocation2] sm:$0xff] %v251
    %254 = vst [vmem:[#allocation2 + $0x8] sm:$0xff] %v252
    // Predicated region
    $region22: #{residual_block.1} parent=1 // pred_check
      _
    $region23: #{residual_block.1} parent=1 // pred_check_branch
      %256 = sbr.rel (0) target = $region25
    $region24: #{residual_block.1} parent=1 // pred_region
      %s258 = ssub.s32 256, 256
      %259 = vsyncadd [#allocation3], %s258
      %s260 = sshll.u32 [#allocation2], 4
      %s261 = int_to_ptr.vmem [resolvable:$true] %s260
      %266 = dma.vmem_to_hbm [thread:$0]  %s261, 256, %s5, [#allocation3], 128, 128, 8
    $region25: #{residual_block.1} parent=1 // pred_fallthru
      _
    // Predicated region
    $region26: #{residual_block.1} parent=1 // pred_check
      _
    $region27: #{residual_block.1} parent=1 // pred_check_branch
      %268 = sbr.rel (0) target = $region29
    $region28: #{residual_block.1} parent=1 // pred_region
      %269 = dma.done [#allocation3], 256
    $region29: #{residual_block.1} parent=1 // pred_fallthru
      _
    %270 = vsyncpa [#allocation3], 1

</llo_original>
